<compile_context>
chip_gen: v7x
topology: tpu7x:2x2x1
jax: 0.10.0
libtpu: 0.0.40
codegen_flags: <defaults>
</compile_context>

<pallas_src>
import functools

import jax
import jax.numpy as jnp
from jax import lax
from jax.experimental import pallas as pl
from jax.experimental.pallas import tpu as pltpu

_B_PAD = 8                              # one sublane tile; row 0 carries rho
_HIGH = jax.lax.Precision.HIGHEST       # host-side setup/reference einsums only


# ----------------------------------------------------------------------------
# Parameter initialization (deterministic, synthetic -- no checkpoint loading)
# ----------------------------------------------------------------------------
def _orthonormal_columns(key, rows, cols, dtype):
    m = jax.random.normal(key, (rows, cols), dtype=jnp.float32)
    q, _ = jnp.linalg.qr(m)
    return q[:, :cols].astype(dtype)


def init_ternary_layer(key, chi_lo, chi_hi, dtype):
    """SimpleTernary(chi_lo, chi_hi, (3,1)): disentangler u + isometry w."""
    ku, kw = jax.random.split(key)
    # u[i, j, p, q]: unitary on two lower-level sites (bottom legs i,j; top p,q)
    u = _orthonormal_columns(ku, chi_lo ** 2, chi_lo ** 2, dtype)
    u = u.reshape(chi_lo, chi_lo, chi_lo, chi_lo)
    # w[a, b, c, t]: isometry mapping 3 lower sites -> 1 upper site of dim chi_hi
    w = _orthonormal_columns(kw, chi_lo ** 3, chi_hi, dtype)
    w = w.reshape(chi_lo, chi_lo, chi_lo, chi_hi)
    return u, w


# ----------------------------------------------------------------------------
# Layer math (host-side glue): two-site descending superoperator from (u, w)
# ----------------------------------------------------------------------------
def descend_superop(u, w):
    """Return S with shape (chi_lo**4, chi_hi**4): rho_lo.flat = S @ rho_hi.flat.

    Average of the three inequivalent descending superoperators of the
    standard ternary MERA (real tensors, so conj == identity).
    """
    chi_lo = u.shape[0]
    chi_hi = w.shape[-1]
    k_c = jnp.einsum('ijpq,klrs,abpt,abrv,qcdm,scdn->ijkltmvn',
                     u, u, w, w, w, w, precision=_HIGH)
    k_l = jnp.einsum('ijpq,kjrs,axpt,ayrv,qcdm,scdn->xiyktmvn',
                     u, u, w, w, w, w, precision=_HIGH)
    k_r = jnp.einsum('ijpq,ilrs,abpt,abrv,qxdm,sydn->jxlytmvn',
                     u, u, w, w, w, w, precision=_HIGH)
    k = (k_c + k_l + k_r) / 3.0
    return k.reshape(chi_lo ** 4, chi_hi ** 4)


def descend_reference(u, w, rho):
    """Pure-JAX reference for one layer (direct 7-tensor contraction)."""
    r_c = jnp.einsum('ijpq,klrs,abpt,abrv,qcdm,scdn,tmvn->ijkl',
                     u, u, w, w, w, w, rho, precision=_HIGH)
    r_l = jnp.einsum('ijpq,kjrs,axpt,ayrv,qcdm,scdn,tmvn->xiyk',
                     u, u, w, w, w, w, rho, precision=_HIGH)
    r_r = jnp.einsum('ijpq,ilrs,abpt,abrv,qxdm,sydn,tmvn->jxly',
                     u, u, w, w, w, w, rho, precision=_HIGH)
    return (r_c + r_l + r_r) / 3.0


# ----------------------------------------------------------------------------
# Helpers
# ----------------------------------------------------------------------------
def _vmem_limit(*byte_counts):
    need = sum(int(b) for b in byte_counts) + (2 << 20)
    return int(min(max(need, 16 << 20), 48 << 20))


def _pick_tk(d_pad, target=512):
    tk = min(d_pad, target)
    while d_pad % tk:
        tk -= 128
    return tk


# ----------------------------------------------------------------------------
# Pallas kernel #1 (hot path): whole layer stack in VMEM, unrolled layer loop.
# ----------------------------------------------------------------------------
def _mera_fused_kernel(v0_ref, st_ref, out_ref):
    totlv = st_ref.shape[0]

    def body(l, v):
        # bf16 operands -> single MXU pass; accumulate in f32.
        return jnp.dot(v.astype(jnp.bfloat16), st_ref[l],
                       preferred_element_type=jnp.float32)

    out_ref[...] = lax.fori_loop(0, totlv, body, v0_ref[...], unroll=True)


def run_mera_fused(v0, st_stack):
    b, d_pad = v0.shape
    totlv = st_stack.shape[0]
    st_bytes = st_stack.size * st_stack.dtype.itemsize
    v_bytes = v0.size * v0.dtype.itemsize
    return pl.pallas_call(
        _mera_fused_kernel,
        out_shape=jax.ShapeDtypeStruct((b, d_pad), jnp.float32),
        grid_spec=pltpu.PrefetchScalarGridSpec(
            num_scalar_prefetch=0,
            grid=(1,),
            in_specs=[
                pl.BlockSpec((b, d_pad), lambda s: (0, 0)),
                pl.BlockSpec((totlv, d_pad, d_pad), lambda s: (0, 0, 0)),
            ],
            out_specs=pl.BlockSpec((b, d_pad), lambda s: (0, 0)),
        ),
        compiler_params=pltpu.CompilerParams(
            dimension_semantics=("arbitrary",),
            vmem_limit_bytes=_vmem_limit(2 * st_bytes, 4 * v_bytes),
        ),
        cost_estimate=pl.CostEstimate(
            flops=2 * b * d_pad * d_pad * totlv,
            transcendentals=0,
            bytes_accessed=st_bytes + 2 * v_bytes),
    )(v0, st_stack)


# ----------------------------------------------------------------------------
# Pallas kernel #2 (fallback for large chi): K-tiled streaming of each layer.
# ----------------------------------------------------------------------------
def _mera_tiled_kernel(v0_ref, st_ref, out_ref, vcur_ref, acc_ref):
    nk, _, tk = vcur_ref.shape           # static
    s = pl.program_id(0)                 # layer step (reversed layer order)
    k = pl.program_id(1)                 # contraction tile

    @pl.when((s == 0) & (k == 0))
    def _():
        # Stash the initial vector pre-split into K chunks (static lane slices).
        for k2 in range(nk):
            vcur_ref[k2] = v0_ref[:, k2 * tk:(k2 + 1) * tk]

    @pl.when(k == 0)
    def _():
        acc_ref[...] = jnp.zeros_like(acc_ref)

    acc_ref[...] += jnp.dot(vcur_ref[k].astype(jnp.bfloat16), st_ref[0],
                            preferred_element_type=jnp.float32)

    @pl.when(k == nk - 1)
    def _():
        # Layer finished: its output becomes the next layer's input.
        for k2 in range(nk):
            vcur_ref[k2] = acc_ref[:, k2 * tk:(k2 + 1) * tk]
        out_ref[...] = acc_ref[...]


def run_mera_tiled(v0, st_stack, *, tk):
    b, d_pad = v0.shape
    totlv = st_stack.shape[0]
    assert d_pad % tk == 0, (d_pad, tk)
    nk = d_pad // tk
    st_blk_bytes = tk * d_pad * st_stack.dtype.itemsize
    v_bytes = v0.size * v0.dtype.itemsize
    return pl.pallas_call(
        _mera_tiled_kernel,
        out_shape=jax.ShapeDtypeStruct((b, d_pad), jnp.float32),
        grid_spec=pltpu.PrefetchScalarGridSpec(
            num_scalar_prefetch=0,
            grid=(totlv, nk),
            in_specs=[
                pl.BlockSpec((b, d_pad), lambda s, k: (0, 0)),
                pl.BlockSpec((1, tk, d_pad), lambda s, k: (s, k, 0),
                             pipeline_mode=pl.Buffered(2)),
            ],
            out_specs=pl.BlockSpec((b, d_pad), lambda s, k: (0, 0)),
            scratch_shapes=[pltpu.VMEM((nk, b, tk), jnp.float32),
                            pltpu.VMEM((b, d_pad), jnp.float32)],
        ),
        compiler_params=pltpu.CompilerParams(
            dimension_semantics=("arbitrary", "arbitrary"),
            vmem_limit_bytes=_vmem_limit(2 * st_blk_bytes, 6 * v_bytes),
        ),
        cost_estimate=pl.CostEstimate(
            flops=2 * b * d_pad * d_pad * totlv,
            transcendentals=0,
            bytes_accessed=st_stack.size * st_stack.dtype.itemsize + 2 * v_bytes),
    )(v0, st_stack)


# ----------------------------------------------------------------------------
# jitted forward (padding/embedding fuses around the pallas_call)
# ----------------------------------------------------------------------------
@functools.partial(jax.jit, static_argnames=("chi0", "use_fused", "tk"))
def mera_forward(x, st_stack, *, chi0, use_fused, tk):
    d_pad = st_stack.shape[-1]
    v0 = jnp.zeros((_B_PAD, d_pad), jnp.float32)
    v0 = v0.at[0, : x.size].set(x.astype(jnp.float32).reshape(-1))
    if use_fused:
        v = run_mera_fused(v0, st_stack)
    else:
        v = run_mera_tiled(v0, st_stack, tk=tk)
    return v[0, : chi0 ** 4].reshape((chi0,) * 4)


# ----------------------------------------------------------------------------
# MeraNet wrapper
# ----------------------------------------------------------------------------
class MeraNetPallas:
    """Mirror of MeraNet(ham, chi, totlv); forward descends a density tensor
    through the layers in reversed order."""

    def __init__(self, ham, chi=6, totlv=3, key=None):
        if key is None:
            key = jax.random.PRNGKey(0)
        self.totlv = totlv
        self.chi = [0] * (totlv + 1)
        self.chi[0] = int(ham.shape[0])
        for i in range(totlv):
            self.chi[i + 1] = min(chi, self.chi[i] ** 3)
        keys = jax.random.split(key, totlv)
        self.layers = [
            init_ternary_layer(keys[i], self.chi[i], self.chi[i + 1], ham.dtype)
            for i in range(totlv)
        ]
        d_raw = max(c ** 4 for c in self.chi)
        self.d_pad = int(pl.cdiv(d_raw, 128) * 128)
        # Superoperator stack built once (parameters are static): no per-call
        # O(chi^9) einsums or multi-MB .at[].set copies inside forward().
        self._st_stack = self._build_st_stack()      # (totlv, D, D) bf16
        stack_bytes = self._st_stack.size * self._st_stack.dtype.itemsize
        self._use_fused = (2 * stack_bytes) <= (40 << 20)   # VMEM-safe budget
        self._tk = _pick_tk(self.d_pad)

    def _build_st_stack(self):
        slabs = []
        for step in range(self.totlv):
            li = self.totlv - 1 - step                 # reversed(self.net)
            u, w = self.layers[li]
            s = descend_superop(u, w)                  # (chi_lo^4, chi_hi^4)
            st = s.T.astype(jnp.float32)               # rho.flat @ st per layer
            st = jnp.pad(st, ((0, self.d_pad - st.shape[0]),
                              (0, self.d_pad - st.shape[1])))
            slabs.append(st.astype(jnp.bfloat16))
        return jnp.stack(slabs)

    def forward(self, x):
        """x: density tensor at the top scale, shape (chi[-1],) * 4."""
        return mera_forward(x, self._st_stack, chi0=self.chi[0],
                            use_fused=self._use_fused, tk=self._tk)

    def forward_reference(self, x):
        rho = x.astype(jnp.float32)
        for li in reversed(range(self.totlv)):
            u, w = self.layers[li]
            rho = descend_reference(u, w, rho)
        return rho


# ----------------------------------------------------------------------------
if __name__ == "__main__":
    key = jax.random.PRNGKey(0)
    k_ham, k_net, k_rho = jax.random.split(key, 3)

    # Two-site Hamiltonian of a spin-1/2 chain: shape (2, 2, 2, 2).
    d = 2
    ham = jax.random.normal(k_ham, (d, d, d, d), dtype=jnp.float32)
    ham = 0.5 * (ham + jnp.transpose(ham, (2, 3, 0, 1)))  # hermitian (unused in fwd)

    chi, totlv = 4, 3
    net = MeraNetPallas(ham, chi=chi, totlv=totlv, key=k_net)

    # Top-scale two-site density tensor x: (chi_top, chi_top, chi_top, chi_top)
    chi_top = net.chi[-1]
    m = jax.random.normal(k_rho, (chi_top ** 2, chi_top ** 2), dtype=jnp.float32)
    rho_mat = m @ m.T
    rho_mat = rho_mat / jnp.trace(rho_mat)
    x = rho_mat.reshape(chi_top, chi_top, chi_top, chi_top)

    out = jax.block_until_ready(net.forward(x))
    ref = net.forward_reference(x)

    assert out.shape == (net.chi[0],) * 4, out.shape
    # bf16 operator storage + single-pass MXU (f32 accumulation): ~1e-3 abs err.
    assert jnp.allclose(out, ref, atol=1e-2, rtol=5e-2), (
        float(jnp.max(jnp.abs(out - ref))))
    # The descending superoperator of a (unitary u, isometric w) MERA is trace
    # preserving: the trace of the descended density must stay ~1.
    trace = float(jnp.einsum('ijij->', out))
    assert abs(trace - 1.0) < 5e-2, trace

    # Also exercise the K-tiled fallback (the path used when the full stack
    # would not fit VMEM, e.g. chi>=8 on v7x), forcing two K tiles.
    out_tiled = jax.block_until_ready(
        mera_forward(x, net._st_stack, chi0=net.chi[0], use_fused=False, tk=128))
    assert jnp.allclose(out_tiled, ref, atol=1e-2, rtol=5e-2), (
        float(jnp.max(jnp.abs(out_tiled - ref))))

    print("KERNEL_OK")
</pallas_src>

<mosaic_0001>
module attributes {stable_mosaic.version = 11 : i64} {
  func.func @_mera_fused_kernel(%arg0: i32, %arg1: memref<8x256xf32, #tpu.memory_space<vmem>>, %arg2: memref<3x256x256xbf16, #tpu.memory_space<vmem>>, %arg3: memref<8x256xf32, #tpu.memory_space<vmem>>) attributes {dimension_semantics = [#tpu.dimension_semantics<arbitrary>], iteration_bounds = array<i64: 1>, scalar_prefetch = 0 : i64, scratch_operands = 0 : i64, tpu.core_type = #tpu.core_type<tc>, window_params = [{pipeline_mode = #tpu.pipeline_mode<synchronous>, transform_indices = @transform_0, window_bounds = array<i64: 8, 256>}, {pipeline_mode = #tpu.pipeline_mode<synchronous>, transform_indices = @transform_1, window_bounds = array<i64: 3, 256, 256>}, {pipeline_mode = #tpu.pipeline_mode<synchronous>, transform_indices = @transform_2, window_bounds = array<i64: 8, 256>}]} {
    %c0 = arith.constant 0 : index
    %c0_0 = arith.constant 0 : index
    %0 = vector.load %arg1[%c0, %c0_0] : memref<8x256xf32, #tpu.memory_space<vmem>>, vector<8x256xf32>
    %c0_i32 = arith.constant 0 : i32
    %1 = arith.truncf %0 : vector<8x256xf32> to vector<8x256xbf16>
    %2 = arith.index_cast %c0_i32 : i32 to index
    %c0_1 = arith.constant 0 : index
    %c0_2 = arith.constant 0 : index
    %3 = vector.load %arg2[%2, %c0_1, %c0_2] : memref<3x256x256xbf16, #tpu.memory_space<vmem>>, vector<1x256x256xbf16>
    %4 = vector.shape_cast %3 : vector<1x256x256xbf16> to vector<256x256xbf16>
    %cst = arith.constant dense<0.000000e+00> : vector<8x256xf32>
    %5 = tpu.matmul %1, %4, %cst {dimension_numbers = #tpu.dot_dimension_numbers<[1], [0], [0], [1], [0, 0, 1, 1], [], []>} : vector<8x256xbf16>, vector<256x256xbf16>, vector<8x256xf32> -> vector<8x256xf32>
    %c1_i32 = arith.constant 1 : i32
    %6 = arith.truncf %5 : vector<8x256xf32> to vector<8x256xbf16>
    %7 = arith.index_cast %c1_i32 : i32 to index
    %c0_3 = arith.constant 0 : index
    %c0_4 = arith.constant 0 : index
    %8 = vector.load %arg2[%7, %c0_3, %c0_4] : memref<3x256x256xbf16, #tpu.memory_space<vmem>>, vector<1x256x256xbf16>
    %9 = vector.shape_cast %8 : vector<1x256x256xbf16> to vector<256x256xbf16>
    %cst_5 = arith.constant dense<0.000000e+00> : vector<8x256xf32>
    %10 = tpu.matmul %6, %9, %cst_5 {dimension_numbers = #tpu.dot_dimension_numbers<[1], [0], [0], [1], [0, 0, 1, 1], [], []>} : vector<8x256xbf16>, vector<256x256xbf16>, vector<8x256xf32> -> vector<8x256xf32>
    %c2_i32 = arith.constant 2 : i32
    %11 = arith.truncf %10 : vector<8x256xf32> to vector<8x256xbf16>
    %12 = arith.index_cast %c2_i32 : i32 to index
    %c0_6 = arith.constant 0 : index
    %c0_7 = arith.constant 0 : index
    %13 = vector.load %arg2[%12, %c0_6, %c0_7] : memref<3x256x256xbf16, #tpu.memory_space<vmem>>, vector<1x256x256xbf16>
    %14 = vector.shape_cast %13 : vector<1x256x256xbf16> to vector<256x256xbf16>
    %cst_8 = arith.constant dense<0.000000e+00> : vector<8x256xf32>
    %15 = tpu.matmul %11, %14, %cst_8 {dimension_numbers = #tpu.dot_dimension_numbers<[1], [0], [0], [1], [0, 0, 1, 1], [], []>} : vector<8x256xbf16>, vector<256x256xbf16>, vector<8x256xf32> -> vector<8x256xf32>
    %c3_i32 = arith.constant 3 : i32
    %c0_9 = arith.constant 0 : index
    %c0_10 = arith.constant 0 : index
    %16 = vector.load %arg3[%c0_9, %c0_10] : memref<8x256xf32, #tpu.memory_space<vmem>>, vector<8x256xf32>
    tpu.vector_store %arg3[%c0_9, %c0_10], %15 {strides = array<i32>} : memref<8x256xf32, #tpu.memory_space<vmem>>, vector<8x256xf32>,
    return
  }
  func.func @transform_0(%arg0: i32) -> (i32, i32) {
    %c0_i32 = arith.constant 0 : i32
    %c0_i32_0 = arith.constant 0 : i32
    %c0_i32_1 = arith.constant 0 : i32
    return %c0_i32, %c0_i32_0 : i32, i32
  }
  func.func @transform_1(%arg0: i32) -> (i32, i32, i32) {
    %c0_i32 = arith.constant 0 : i32
    %c0_i32_0 = arith.constant 0 : i32
    %c0_i32_1 = arith.constant 0 : i32
    %c0_i32_2 = arith.constant 0 : i32
    return %c0_i32, %c0_i32_0, %c0_i32_1 : i32, i32, i32
  }
  func.func @transform_2(%arg0: i32) -> (i32, i32) {
    %c0_i32 = arith.constant 0 : i32
    %c0_i32_0 = arith.constant 0 : i32
    %c0_i32_1 = arith.constant 0 : i32
    return %c0_i32, %c0_i32_0 : i32, i32
  }
}

</mosaic_0001>

<llo_original>
// kernel: squeeze.1
$region0: #{squeeze.1}
  %s0 = inlined_call_operand.vmem [shape: f32[16], index: 0, kind: input, shape index: {}]
  %s1 = inlined_call_operand.hbm [shape: f32[2,2,2,2], index: 1, kind: output, shape index: {}]
  $region1: #{squeeze.1} parent=0
    #allocation0 [shape = 'u8[4096]{0}', space=vmem, size = 0x1000, scoped, tag = 'operand span for operand 1']
    #allocation1 [shape = 's32[1]{0}', space=sflag, size = 0x4, scoped, tag = 'scoped memory for squeeze.1']
    #allocation2 [shape = 'u8[16384]{0}', space=vmem, size = 0x4000, scoped, tag = 'scoped mem for output reshape']
    #allocation3 [shape = 'u8[4096]{0}', space=vmem, size = 0x1000, scoped, tag = 'scoped mem for input reshape']
    %2 = vsyncpa [#allocation1], 0
    %s4 = sshllo.u32 0, 1
    %v5 = vld [vmem:[%s0] sm:%s4]
    %6 = vst [vmem:[#allocation3] sm:%s4] %v5
    %v7 = vld [vmem:[#allocation3] sm:$0x1]
    %vm8 = vcmask 15360
    %9 = vst.msk [vmem:[#allocation2] sm:$0x1] %vm8, %v7
    %v10 = vld [vmem:[#allocation3] sm:$0x1]
    %11 = vrot.lane.b32.xlu0 %v10, 126
    %v12 = vpop.permute.xlu0 %11
    %vm13 = vcmask 15360
    %s14 = scalar_lea.vmem [#allocation2], 1
    %15 = vst.msk [vmem:[%s14] sm:$0x1] %vm13, %v12
    %v16 = vld [vmem:[#allocation3] sm:$0x1]
    %17 = vrot.lane.b32.xlu0 %v16, 124
    %v18 = vpop.permute.xlu0 %17
    %vm19 = vcmask 15360
    %s20 = scalar_lea.vmem [#allocation2], 8
    %21 = vst.msk [vmem:[%s20] sm:$0x1] %vm19, %v18
    %v22 = vld [vmem:[#allocation3] sm:$0x1]
    %23 = vrot.lane.b32.xlu0 %v22, 122
    %v24 = vpop.permute.xlu0 %23
    %vm25 = vcmask 15360
    %s26 = scalar_lea.vmem [#allocation2], 9
    %27 = vst.msk [vmem:[%s26] sm:$0x1] %vm25, %v24
    %v28 = vld [vmem:[#allocation3] sm:$0x1]
    %29 = vrot.lane.b32.xlu0 %v28, 120
    %v30 = vpop.permute.xlu0 %29
    %vm31 = vcmask 15360
    %s32 = scalar_lea.vmem [#allocation2], 16
    %33 = vst.msk [vmem:[%s32] sm:$0x1] %vm31, %v30
    %v34 = vld [vmem:[#allocation3] sm:$0x1]
    %35 = vrot.lane.b32.xlu0 %v34, 118
    %v36 = vpop.permute.xlu0 %35
    %vm37 = vcmask 15360
    %s38 = scalar_lea.vmem [#allocation2], 17
    %39 = vst.msk [vmem:[%s38] sm:$0x1] %vm37, %v36
    %v40 = vld [vmem:[#allocation3] sm:$0x1]
    %41 = vrot.lane.b32.xlu0 %v40, 116
    %v42 = vpop.permute.xlu0 %41
    %vm43 = vcmask 15360
    %s44 = scalar_lea.vmem [#allocation2], 24
    %45 = vst.msk [vmem:[%s44] sm:$0x1] %vm43, %v42
    %v46 = vld [vmem:[#allocation3] sm:$0x1]
    %47 = vrot.lane.b32.xlu0 %v46, 114
    %v48 = vpop.permute.xlu0 %47
    %vm49 = vcmask 15360
    %s50 = scalar_lea.vmem [#allocation2], 25
    %51 = vst.msk [vmem:[%s50] sm:$0x1] %vm49, %v48
    %s53 = sshllo.u32 0, 2
    %v55 = vld [vmem:[#allocation2] sm:%s53]
    %s56 = sshllo.u32 0, 2
    %57 = vst [vmem:[#allocation0] sm:%s56] %v55
    %s58 = scalar_lea.vmem [#allocation2], 8
    %v59 = vld [vmem:[%s58] sm:%s53]
    %s60 = sshllo.u32 0, 2
    %s61 = scalar_lea.vmem [#allocation0], 2
    %62 = vst [vmem:[%s61] sm:%s60] %v59
    %s63 = scalar_lea.vmem [#allocation2], 16
    %v64 = vld [vmem:[%s63] sm:%s53]
    %s65 = sshllo.u32 0, 2
    %s66 = smul.addr 2, 2
    %s67 = scalar_lea.vmem [#allocation0], %s66
    %68 = vst [vmem:[%s67] sm:%s65] %v64
    %s69 = scalar_lea.vmem [#allocation2], 24
    %v70 = vld [vmem:[%s69] sm:%s53]
    %s71 = sshllo.u32 0, 2
    %s72 = smul.addr 2, 3
    %s73 = scalar_lea.vmem [#allocation0], %s72
    %74 = vst [vmem:[%s73] sm:%s71] %v70
    %s76 = ssub.s32 128, 128
    %77 = vsyncadd [#allocation1], %s76
    %s79 = sshll.u32 [#allocation0], 4
    %s80 = int_to_ptr.vmem [resolvable:$true] %s79
    %82 = dma.vmem_to_hbm [thread:$0]  %s80, 128, %s1, [#allocation1]
    %83 = dma.done [#allocation1], 128
    %84 = vsyncpa [#allocation1], 1

// kernel: mera_forward.1
$region0: #{mera_forward.1}
  #allocation0 [shape = 'u32[]', space=smem, size = 0x4, offset = 0x4, fixed_abs, tag = 'smem constant byte address 0x4 - core index']
  #allocation1 [shape = 'u32[144,128]{1,0:T(1,128)}', space=vmem, size = 0x12000, scoped, tag = 'internal scratch']
  %s0 = inlined_call_operand.vmem [shape: f32[8,256], index: 0, kind: input, shape index: {}]
  %s1 = inlined_call_operand.hbm [shape: bf16[3,256,256], index: 1, kind: input, shape index: {}]
  %s2 = inlined_call_operand.vmem [shape: f32[8,256], index: 2, kind: output, shape index: {}]
  %s3 = sld [smem:[#allocation0]]
  $region22: #{mera_forward.1} parent=0
    _
  %s5 = ssub.s32 1, %s3
  %s6 = scalar_select 0, %s5, %s3
  $region1: #{mera_forward.1} parent=0
    #allocation2 [shape = 'u8[393216]{0}', space=vmem, size = 0x60000, scoped, tag = 'input window, operand 1, single buffered']
    #allocation3 [shape = 's32[1]{0}', space=sflag, size = 0x4, scoped, tag = 'scoped memory for mera_forward.1']
    %7 = vsyncpa [#allocation3], 0
    // Predicated region
    $region2: #{mera_forward.1} parent=1 // pred_check
      _
    $region3: #{mera_forward.1} parent=1 // pred_check_branch
      %9 = sbr.rel (0) target = $region5
    $region4: #{mera_forward.1} parent=1 // pred_region
      _
    $region5: #{mera_forward.1} parent=1 // pred_fallthru
      _
    // Predicated region
    $region6: #{mera_forward.1} parent=1 // pred_check
      _
    $region7: #{mera_forward.1} parent=1 // pred_check_branch
      %11 = sbr.rel (0) target = $region9
    $region8: #{mera_forward.1} parent=1 // pred_region
      %s13 = ssub.s32 12288, 12288
      %14 = vsyncadd [#allocation3], %s13
      %s15 = sshll.u32 [#allocation2], 4
      %s16 = int_to_ptr.vmem [resolvable:$true] %s15
      %21 = dma.hbm_to_vmem [thread:$0]  %s1, 12288, %s16, [#allocation3], 128, 128, 8
    $region9: #{mera_forward.1} parent=1 // pred_fallthru
      _
    // Predicated region
    $region10: #{mera_forward.1} parent=1 // pred_check
      _
    $region11: #{mera_forward.1} parent=1 // pred_check_branch
      %23 = sbr.rel (0) target = $region13
    $region12: #{mera_forward.1} parent=1 // pred_region
      %24 = dma.done [#allocation3], 12288
    $region13: #{mera_forward.1} parent=1 // pred_fallthru
      _
    %v25 = vld [vmem:[%s0] sm:$0xff]
    %v26 = vld [vmem:[%s0 + $0x8] sm:$0xff]
    %v27 = vpack.c.bf16 %v25, %v25
    %v28 = vpack.c.bf16 %v26, %v26
    %v29 = vld [vmem:[#allocation2] sm:$0xff]
    %v30 = vld [vmem:[#allocation2 + $0x8] sm:$0xff]
    %v31 = vld [vmem:[#allocation2 + $0x10] sm:$0xff]
    %v32 = vld [vmem:[#allocation2 + $0x18] sm:$0xff]
    %v33 = vld [vmem:[#allocation2 + $0x20] sm:$0xff]
    %v34 = vld [vmem:[#allocation2 + $0x28] sm:$0xff]
    %v35 = vld [vmem:[#allocation2 + $0x30] sm:$0xff]
    %v36 = vld [vmem:[#allocation2 + $0x38] sm:$0xff]
    %v37 = vld [vmem:[#allocation2 + $0x40] sm:$0xff]
    %v38 = vld [vmem:[#allocation2 + $0x48] sm:$0xff]
    %v39 = vld [vmem:[#allocation2 + $0x50] sm:$0xff]
    %v40 = vld [vmem:[#allocation2 + $0x58] sm:$0xff]
    %v41 = vld [vmem:[#allocation2 + $0x60] sm:$0xff]
    %v42 = vld [vmem:[#allocation2 + $0x68] sm:$0xff]
    %v43 = vld [vmem:[#allocation2 + $0x70] sm:$0xff]
    %v44 = vld [vmem:[#allocation2 + $0x78] sm:$0xff]
    %v45 = vld [vmem:[#allocation2 + $0x80] sm:$0xff]
    %v46 = vld [vmem:[#allocation2 + $0x88] sm:$0xff]
    %v47 = vld [vmem:[#allocation2 + $0x90] sm:$0xff]
    %v48 = vld [vmem:[#allocation2 + $0x98] sm:$0xff]
    %v49 = vld [vmem:[#allocation2 + $0xa0] sm:$0xff]
    %v50 = vld [vmem:[#allocation2 + $0xa8] sm:$0xff]
    %v51 = vld [vmem:[#allocation2 + $0xb0] sm:$0xff]
    %v52 = vld [vmem:[#allocation2 + $0xb8] sm:$0xff]
    %v53 = vld [vmem:[#allocation2 + $0xc0] sm:$0xff]
    %v54 = vld [vmem:[#allocation2 + $0xc8] sm:$0xff]
    %v55 = vld [vmem:[#allocation2 + $0xd0] sm:$0xff]
    %v56 = vld [vmem:[#allocation2 + $0xd8] sm:$0xff]
    %v57 = vld [vmem:[#allocation2 + $0xe0] sm:$0xff]
    %v58 = vld [vmem:[#allocation2 + $0xe8] sm:$0xff]
    %v59 = vld [vmem:[#allocation2 + $0xf0] sm:$0xff]
    %v60 = vld [vmem:[#allocation2 + $0xf8] sm:$0xff]
    %v93 = vunpack.c.l.b16 %v29
    %v94 = vunpack.c.h.b16 %v29
    %v95 = vunpack.c.l.b16 %v30
    %v96 = vunpack.c.h.b16 %v30
    %v97 = vunpack.c.l.b16 %v31
    %v98 = vunpack.c.h.b16 %v31
    %v99 = vunpack.c.l.b16 %v32
    %v100 = vunpack.c.h.b16 %v32
    %v101 = vunpack.c.l.b16 %v33
    %v102 = vunpack.c.h.b16 %v33
    %v103 = vunpack.c.l.b16 %v34
    %v104 = vunpack.c.h.b16 %v34
    %v105 = vunpack.c.l.b16 %v35
    %v106 = vunpack.c.h.b16 %v35
    %v107 = vunpack.c.l.b16 %v36
    %v108 = vunpack.c.h.b16 %v36
    %v109 = vunpack.c.l.b16 %v37
    %v110 = vunpack.c.h.b16 %v37
    %v111 = vunpack.c.l.b16 %v38
    %v112 = vunpack.c.h.b16 %v38
    %v113 = vunpack.c.l.b16 %v39
    %v114 = vunpack.c.h.b16 %v39
    %v115 = vunpack.c.l.b16 %v40
    %v116 = vunpack.c.h.b16 %v40
    %v117 = vunpack.c.l.b16 %v41
    %v118 = vunpack.c.h.b16 %v41
    %v119 = vunpack.c.l.b16 %v42
    %v120 = vunpack.c.h.b16 %v42
    %v121 = vunpack.c.l.b16 %v43
    %v122 = vunpack.c.h.b16 %v43
    %v123 = vunpack.c.l.b16 %v44
    %v124 = vunpack.c.h.b16 %v44
    %v125 = vunpack.c.l.b16 %v45
    %v126 = vunpack.c.h.b16 %v45
    %v127 = vunpack.c.l.b16 %v46
    %v128 = vunpack.c.h.b16 %v46
    %v129 = vunpack.c.l.b16 %v47
    %v130 = vunpack.c.h.b16 %v47
    %v131 = vunpack.c.l.b16 %v48
    %v132 = vunpack.c.h.b16 %v48
    %v133 = vunpack.c.l.b16 %v49
    %v134 = vunpack.c.h.b16 %v49
    %v135 = vunpack.c.l.b16 %v50
    %v136 = vunpack.c.h.b16 %v50
    %v137 = vunpack.c.l.b16 %v51
    %v138 = vunpack.c.h.b16 %v51
    %v139 = vunpack.c.l.b16 %v52
    %v140 = vunpack.c.h.b16 %v52
    %v141 = vunpack.c.l.b16 %v53
    %v142 = vunpack.c.h.b16 %v53
    %v143 = vunpack.c.l.b16 %v54
    %v144 = vunpack.c.h.b16 %v54
    %v145 = vunpack.c.l.b16 %v55
    %v146 = vunpack.c.h.b16 %v55
    %v147 = vunpack.c.l.b16 %v56
    %v148 = vunpack.c.h.b16 %v56
    %v149 = vunpack.c.l.b16 %v57
    %v150 = vunpack.c.h.b16 %v57
    %v151 = vunpack.c.l.b16 %v58
    %v152 = vunpack.c.h.b16 %v58
    %v153 = vunpack.c.l.b16 %v59
    %v154 = vunpack.c.h.b16 %v59
    %v155 = vunpack.c.l.b16 %v60
    %v156 = vunpack.c.h.b16 %v60
    %v157 = vpack.c.b16 %v95, %v93
    %v158 = vpack.c.b16 %v96, %v94
    %v159 = vpack.c.b16 %v99, %v97
    %v160 = vpack.c.b16 %v100, %v98
    %v161 = vpack.c.b16 %v103, %v101
    %v162 = vpack.c.b16 %v104, %v102
    %v163 = vpack.c.b16 %v107, %v105
    %v164 = vpack.c.b16 %v108, %v106
    %v165 = vpack.c.b16 %v111, %v109
    %v166 = vpack.c.b16 %v112, %v110
    %v167 = vpack.c.b16 %v115, %v113
    %v168 = vpack.c.b16 %v116, %v114
    %v169 = vpack.c.b16 %v119, %v117
    %v170 = vpack.c.b16 %v120, %v118
    %v171 = vpack.c.b16 %v123, %v121
    %v172 = vpack.c.b16 %v124, %v122
    %v173 = vpack.c.b16 %v127, %v125
    %v174 = vpack.c.b16 %v128, %v126
    %v175 = vpack.c.b16 %v131, %v129
    %v176 = vpack.c.b16 %v132, %v130
    %v177 = vpack.c.b16 %v135, %v133
    %v178 = vpack.c.b16 %v136, %v134
    %v179 = vpack.c.b16 %v139, %v137
    %v180 = vpack.c.b16 %v140, %v138
    %v181 = vpack.c.b16 %v143, %v141
    %v182 = vpack.c.b16 %v144, %v142
    %v183 = vpack.c.b16 %v147, %v145
    %v184 = vpack.c.b16 %v148, %v146
    %v185 = vpack.c.b16 %v151, %v149
    %v186 = vpack.c.b16 %v152, %v150
    %v187 = vpack.c.b16 %v155, %v153
    %v188 = vpack.c.b16 %v156, %v154
    %221 = vmatprep.subr.bf16.mxu0 %v158
    %222 = vmatpush1.bf16.msra.mxu0 %v157
    %223 = vmatprep.subr.bf16.mxu0 %v160
    %224 = vmatpush1.bf16.msra.mxu0 %v159
    %225 = vmatprep.subr.bf16.mxu0 %v162
    %226 = vmatpush1.bf16.msra.mxu0 %v161
    %227 = vmatprep.subr.bf16.mxu0 %v164
    %228 = vmatpush1.bf16.msra.mxu0 %v163
    %229 = vmatprep.subr.bf16.mxu0 %v166
    %230 = vmatpush1.bf16.msra.mxu0 %v165
    %231 = vmatprep.subr.bf16.mxu0 %v168
    %232 = vmatpush1.bf16.msra.mxu0 %v167
    %233 = vmatprep.subr.bf16.mxu0 %v170
    %234 = vmatpush1.bf16.msra.mxu0 %v169
    %235 = vmatprep.subr.bf16.mxu0 %v172
    %236 = vmatpush1.bf16.msra.mxu0 %v171
    %237 = vmatprep.subr.bf16.mxu0 %v174
    %238 = vmatpush1.bf16.msra.mxu0 %v173
    %239 = vmatprep.subr.bf16.mxu0 %v176
    %240 = vmatpush1.bf16.msra.mxu0 %v175
    %241 = vmatprep.subr.bf16.mxu0 %v178
    %242 = vmatpush1.bf16.msra.mxu0 %v177
    %243 = vmatprep.subr.bf16.mxu0 %v180
    %244 = vmatpush1.bf16.msra.mxu0 %v179
    %245 = vmatprep.subr.bf16.mxu0 %v182
    %246 = vmatpush1.bf16.msra.mxu0 %v181
    %247 = vmatprep.subr.bf16.mxu0 %v184
    %248 = vmatpush1.bf16.msra.mxu0 %v183
    %249 = vmatprep.subr.bf16.mxu0 %v186
    %250 = vmatpush1.bf16.msra.mxu0 %v185
    %251 = vmatprep.subr.bf16.mxu0 %v188
    %252 = vmatpush1.bf16.msra.mxu0 %v187
    %253 = vmatprep.mubr.bf16.mxu0 %v28
    %254 = vmatmul.mubr.bf16.gmra.mrb[0].mxu0 %v27
    %v255 = vpop.f32.mrb[0].mxu0
    %v256 = vadd.f32 0.0, %v255
    %v257 = vpop.f32.mrb[0].mxu0
    %v258 = vadd.f32 0.0, %v257
    %v259 = vpop.f32.mrb[0].mxu0
    %v260 = vpop.f32.mrb[0].mxu0
    %261 = vdwg.mxu0
    %v262 = vpack.c.bf16 %v256, %v256
    %v263 = vpack.c.bf16 %v258, %v258
    %s264 = scalar_lea.vmem [#allocation2], 256
    %v265 = vld [vmem:[%s264] sm:$0xff]
    %v266 = vld [vmem:[%s264 + $0x8] sm:$0xff]
    %v267 = vld [vmem:[%s264 + $0x10] sm:$0xff]
    %v268 = vld [vmem:[%s264 + $0x18] sm:$0xff]
    %v269 = vld [vmem:[%s264 + $0x20] sm:$0xff]
    %v270 = vld [vmem:[%s264 + $0x28] sm:$0xff]
    %v271 = vld [vmem:[%s264 + $0x30] sm:$0xff]
    %v272 = vld [vmem:[%s264 + $0x38] sm:$0xff]
    %v273 = vld [vmem:[%s264 + $0x40] sm:$0xff]
    %v274 = vld [vmem:[%s264 + $0x48] sm:$0xff]
    %v275 = vld [vmem:[%s264 + $0x50] sm:$0xff]
    %v276 = vld [vmem:[%s264 + $0x58] sm:$0xff]
    %v277 = vld [vmem:[%s264 + $0x60] sm:$0xff]
    %v278 = vld [vmem:[%s264 + $0x68] sm:$0xff]
    %v279 = vld [vmem:[%s264 + $0x70] sm:$0xff]
    %v280 = vld [vmem:[%s264 + $0x78] sm:$0xff]
    %v281 = vld [vmem:[%s264 + $0x80] sm:$0xff]
    %v282 = vld [vmem:[%s264 + $0x88] sm:$0xff]
    %v283 = vld [vmem:[%s264 + $0x90] sm:$0xff]
    %v284 = vld [vmem:[%s264 + $0x98] sm:$0xff]
    %v285 = vld [vmem:[%s264 + $0xa0] sm:$0xff]
    %v286 = vld [vmem:[%s264 + $0xa8] sm:$0xff]
    %v287 = vld [vmem:[%s264 + $0xb0] sm:$0xff]
    %v288 = vld [vmem:[%s264 + $0xb8] sm:$0xff]
    %v289 = vld [vmem:[%s264 + $0xc0] sm:$0xff]
    %v290 = vld [vmem:[%s264 + $0xc8] sm:$0xff]
    %v291 = vld [vmem:[%s264 + $0xd0] sm:$0xff]
    %v292 = vld [vmem:[%s264 + $0xd8] sm:$0xff]
    %v293 = vld [vmem:[%s264 + $0xe0] sm:$0xff]
    %v294 = vld [vmem:[%s264 + $0xe8] sm:$0xff]
    %v295 = vld [vmem:[%s264 + $0xf0] sm:$0xff]
    %v296 = vld [vmem:[%s264 + $0xf8] sm:$0xff]
    %v329 = vunpack.c.l.b16 %v265
    %v330 = vunpack.c.h.b16 %v265
    %v331 = vunpack.c.l.b16 %v266
    %v332 = vunpack.c.h.b16 %v266
    %v333 = vunpack.c.l.b16 %v267
    %v334 = vunpack.c.h.b16 %v267
    %v335 = vunpack.c.l.b16 %v268
    %v336 = vunpack.c.h.b16 %v268
    %v337 = vunpack.c.l.b16 %v269
    %v338 = vunpack.c.h.b16 %v269
    %v339 = vunpack.c.l.b16 %v270
    %v340 = vunpack.c.h.b16 %v270
    %v341 = vunpack.c.l.b16 %v271
    %v342 = vunpack.c.h.b16 %v271
    %v343 = vunpack.c.l.b16 %v272
    %v344 = vunpack.c.h.b16 %v272
    %v345 = vunpack.c.l.b16 %v273
    %v346 = vunpack.c.h.b16 %v273
    %v347 = vunpack.c.l.b16 %v274
    %v348 = vunpack.c.h.b16 %v274
    %v349 = vunpack.c.l.b16 %v275
    %v350 = vunpack.c.h.b16 %v275
    %v351 = vunpack.c.l.b16 %v276
    %v352 = vunpack.c.h.b16 %v276
    %v353 = vunpack.c.l.b16 %v277
    %v354 = vunpack.c.h.b16 %v277
    %v355 = vunpack.c.l.b16 %v278
    %v356 = vunpack.c.h.b16 %v278
    %v357 = vunpack.c.l.b16 %v279
    %v358 = vunpack.c.h.b16 %v279
    %v359 = vunpack.c.l.b16 %v280
    %v360 = vunpack.c.h.b16 %v280
    %v361 = vunpack.c.l.b16 %v281
    %v362 = vunpack.c.h.b16 %v281
    %v363 = vunpack.c.l.b16 %v282
    %v364 = vunpack.c.h.b16 %v282
    %v365 = vunpack.c.l.b16 %v283
    %v366 = vunpack.c.h.b16 %v283
    %v367 = vunpack.c.l.b16 %v284
    %v368 = vunpack.c.h.b16 %v284
    %v369 = vunpack.c.l.b16 %v285
    %v370 = vunpack.c.h.b16 %v285
    %v371 = vunpack.c.l.b16 %v286
    %v372 = vunpack.c.h.b16 %v286
    %v373 = vunpack.c.l.b16 %v287
    %v374 = vunpack.c.h.b16 %v287
    %v375 = vunpack.c.l.b16 %v288
    %v376 = vunpack.c.h.b16 %v288
    %v377 = vunpack.c.l.b16 %v289
    %v378 = vunpack.c.h.b16 %v289
    %v379 = vunpack.c.l.b16 %v290
    %v380 = vunpack.c.h.b16 %v290
    %v381 = vunpack.c.l.b16 %v291
    %v382 = vunpack.c.h.b16 %v291
    %v383 = vunpack.c.l.b16 %v292
    %v384 = vunpack.c.h.b16 %v292
    %v385 = vunpack.c.l.b16 %v293
    %v386 = vunpack.c.h.b16 %v293
    %v387 = vunpack.c.l.b16 %v294
    %v388 = vunpack.c.h.b16 %v294
    %v389 = vunpack.c.l.b16 %v295
    %v390 = vunpack.c.h.b16 %v295
    %v391 = vunpack.c.l.b16 %v296
    %v392 = vunpack.c.h.b16 %v296
    %v393 = vpack.c.b16 %v331, %v329
    %v394 = vpack.c.b16 %v332, %v330
    %v395 = vpack.c.b16 %v335, %v333
    %v396 = vpack.c.b16 %v336, %v334
    %v397 = vpack.c.b16 %v339, %v337
    %v398 = vpack.c.b16 %v340, %v338
    %v399 = vpack.c.b16 %v343, %v341
    %v400 = vpack.c.b16 %v344, %v342
    %v401 = vpack.c.b16 %v347, %v345
    %v402 = vpack.c.b16 %v348, %v346
    %v403 = vpack.c.b16 %v351, %v349
    %v404 = vpack.c.b16 %v352, %v350
    %v405 = vpack.c.b16 %v355, %v353
    %v406 = vpack.c.b16 %v356, %v354
    %v407 = vpack.c.b16 %v359, %v357
    %v408 = vpack.c.b16 %v360, %v358
    %v409 = vpack.c.b16 %v363, %v361
    %v410 = vpack.c.b16 %v364, %v362
    %v411 = vpack.c.b16 %v367, %v365
    %v412 = vpack.c.b16 %v368, %v366
    %v413 = vpack.c.b16 %v371, %v369
    %v414 = vpack.c.b16 %v372, %v370
    %v415 = vpack.c.b16 %v375, %v373
    %v416 = vpack.c.b16 %v376, %v374
    %v417 = vpack.c.b16 %v379, %v377
    %v418 = vpack.c.b16 %v380, %v378
    %v419 = vpack.c.b16 %v383, %v381
    %v420 = vpack.c.b16 %v384, %v382
    %v421 = vpack.c.b16 %v387, %v385
    %v422 = vpack.c.b16 %v388, %v386
    %v423 = vpack.c.b16 %v391, %v389
    %v424 = vpack.c.b16 %v392, %v390
    %457 = vmatprep.subr.bf16.mxu0 %v394
    %458 = vmatpush1.bf16.msra.mxu0 %v393
    %459 = vmatprep.subr.bf16.mxu0 %v396
    %460 = vmatpush1.bf16.msra.mxu0 %v395
    %461 = vmatprep.subr.bf16.mxu0 %v398
    %462 = vmatpush1.bf16.msra.mxu0 %v397
    %463 = vmatprep.subr.bf16.mxu0 %v400
    %464 = vmatpush1.bf16.msra.mxu0 %v399
    %465 = vmatprep.subr.bf16.mxu0 %v402
    %466 = vmatpush1.bf16.msra.mxu0 %v401
    %467 = vmatprep.subr.bf16.mxu0 %v404
    %468 = vmatpush1.bf16.msra.mxu0 %v403
    %469 = vmatprep.subr.bf16.mxu0 %v406
    %470 = vmatpush1.bf16.msra.mxu0 %v405
    %471 = vmatprep.subr.bf16.mxu0 %v408
    %472 = vmatpush1.bf16.msra.mxu0 %v407
    %473 = vmatprep.subr.bf16.mxu0 %v410
    %474 = vmatpush1.bf16.msra.mxu0 %v409
    %475 = vmatprep.subr.bf16.mxu0 %v412
    %476 = vmatpush1.bf16.msra.mxu0 %v411
    %477 = vmatprep.subr.bf16.mxu0 %v414
    %478 = vmatpush1.bf16.msra.mxu0 %v413
    %479 = vmatprep.subr.bf16.mxu0 %v416
    %480 = vmatpush1.bf16.msra.mxu0 %v415
    %481 = vmatprep.subr.bf16.mxu0 %v418
    %482 = vmatpush1.bf16.msra.mxu0 %v417
    %483 = vmatprep.subr.bf16.mxu0 %v420
    %484 = vmatpush1.bf16.msra.mxu0 %v419
    %485 = vmatprep.subr.bf16.mxu0 %v422
    %486 = vmatpush1.bf16.msra.mxu0 %v421
    %487 = vmatprep.subr.bf16.mxu0 %v424
    %488 = vmatpush1.bf16.msra.mxu0 %v423
    %489 = vmatprep.mubr.bf16.mxu0 %v263
    %490 = vmatmul.mubr.bf16.gmra.mrb[0].mxu0 %v262
    %v491 = vpop.f32.mrb[0].mxu0
    %v492 = vadd.f32 0.0, %v491
    %v493 = vpop.f32.mrb[0].mxu0
    %v494 = vadd.f32 0.0, %v493
    %v495 = vpop.f32.mrb[0].mxu0
    %v496 = vpop.f32.mrb[0].mxu0
    %497 = vdwg.mxu0
    %v498 = vpack.c.bf16 %v492, %v492
    %v499 = vpack.c.bf16 %v494, %v494
    %s500 = scalar_lea.vmem [#allocation2], 512
    %v501 = vld [vmem:[%s500] sm:$0xff]
    %v502 = vld [vmem:[%s500 + $0x8] sm:$0xff]
    %v503 = vld [vmem:[%s500 + $0x10] sm:$0xff]
    %v504 = vld [vmem:[%s500 + $0x18] sm:$0xff]
    %v505 = vld [vmem:[%s500 + $0x20] sm:$0xff]
    %v506 = vld [vmem:[%s500 + $0x28] sm:$0xff]
    %v507 = vld [vmem:[%s500 + $0x30] sm:$0xff]
    %v508 = vld [vmem:[%s500 + $0x38] sm:$0xff]
    %v509 = vld [vmem:[%s500 + $0x40] sm:$0xff]
    %v510 = vld [vmem:[%s500 + $0x48] sm:$0xff]
    %v511 = vld [vmem:[%s500 + $0x50] sm:$0xff]
    %v512 = vld [vmem:[%s500 + $0x58] sm:$0xff]
    %v513 = vld [vmem:[%s500 + $0x60] sm:$0xff]
    %v514 = vld [vmem:[%s500 + $0x68] sm:$0xff]
    %v515 = vld [vmem:[%s500 + $0x70] sm:$0xff]
    %v516 = vld [vmem:[%s500 + $0x78] sm:$0xff]
    %v517 = vld [vmem:[%s500 + $0x80] sm:$0xff]
    %v518 = vld [vmem:[%s500 + $0x88] sm:$0xff]
    %v519 = vld [vmem:[%s500 + $0x90] sm:$0xff]
    %v520 = vld [vmem:[%s500 + $0x98] sm:$0xff]
    %v521 = vld [vmem:[%s500 + $0xa0] sm:$0xff]
    %v522 = vld [vmem:[%s500 + $0xa8] sm:$0xff]
    %v523 = vld [vmem:[%s500 + $0xb0] sm:$0xff]
    %v524 = vld [vmem:[%s500 + $0xb8] sm:$0xff]
    %v525 = vld [vmem:[%s500 + $0xc0] sm:$0xff]
    %v526 = vld [vmem:[%s500 + $0xc8] sm:$0xff]
    %v527 = vld [vmem:[%s500 + $0xd0] sm:$0xff]
    %v528 = vld [vmem:[%s500 + $0xd8] sm:$0xff]
    %v529 = vld [vmem:[%s500 + $0xe0] sm:$0xff]
    %v530 = vld [vmem:[%s500 + $0xe8] sm:$0xff]
    %v531 = vld [vmem:[%s500 + $0xf0] sm:$0xff]
    %v532 = vld [vmem:[%s500 + $0xf8] sm:$0xff]
    %v565 = vunpack.c.l.b16 %v501
    %v566 = vunpack.c.h.b16 %v501
    %v567 = vunpack.c.l.b16 %v502
    %v568 = vunpack.c.h.b16 %v502
    %v569 = vunpack.c.l.b16 %v503
    %v570 = vunpack.c.h.b16 %v503
    %v571 = vunpack.c.l.b16 %v504
    %v572 = vunpack.c.h.b16 %v504
    %v573 = vunpack.c.l.b16 %v505
    %v574 = vunpack.c.h.b16 %v505
    %v575 = vunpack.c.l.b16 %v506
    %v576 = vunpack.c.h.b16 %v506
    %v577 = vunpack.c.l.b16 %v507
    %v578 = vunpack.c.h.b16 %v507
    %v579 = vunpack.c.l.b16 %v508
    %v580 = vunpack.c.h.b16 %v508
    %v581 = vunpack.c.l.b16 %v509
    %v582 = vunpack.c.h.b16 %v509
    %v583 = vunpack.c.l.b16 %v510
    %v584 = vunpack.c.h.b16 %v510
    %v585 = vunpack.c.l.b16 %v511
    %v586 = vunpack.c.h.b16 %v511
    %v587 = vunpack.c.l.b16 %v512
    %v588 = vunpack.c.h.b16 %v512
    %v589 = vunpack.c.l.b16 %v513
    %v590 = vunpack.c.h.b16 %v513
    %v591 = vunpack.c.l.b16 %v514
    %v592 = vunpack.c.h.b16 %v514
    %v593 = vunpack.c.l.b16 %v515
    %v594 = vunpack.c.h.b16 %v515
    %v595 = vunpack.c.l.b16 %v516
    %v596 = vunpack.c.h.b16 %v516
    %v597 = vunpack.c.l.b16 %v517
    %v598 = vunpack.c.h.b16 %v517
    %v599 = vunpack.c.l.b16 %v518
    %v600 = vunpack.c.h.b16 %v518
    %v601 = vunpack.c.l.b16 %v519
    %v602 = vunpack.c.h.b16 %v519
    %v603 = vunpack.c.l.b16 %v520
    %v604 = vunpack.c.h.b16 %v520
    %v605 = vunpack.c.l.b16 %v521
    %v606 = vunpack.c.h.b16 %v521
    %v607 = vunpack.c.l.b16 %v522
    %v608 = vunpack.c.h.b16 %v522
    %v609 = vunpack.c.l.b16 %v523
    %v610 = vunpack.c.h.b16 %v523
    %v611 = vunpack.c.l.b16 %v524
    %v612 = vunpack.c.h.b16 %v524
    %v613 = vunpack.c.l.b16 %v525
    %v614 = vunpack.c.h.b16 %v525
    %v615 = vunpack.c.l.b16 %v526
    %v616 = vunpack.c.h.b16 %v526
    %v617 = vunpack.c.l.b16 %v527
    %v618 = vunpack.c.h.b16 %v527
    %v619 = vunpack.c.l.b16 %v528
    %v620 = vunpack.c.h.b16 %v528
    %v621 = vunpack.c.l.b16 %v529
    %v622 = vunpack.c.h.b16 %v529
    %v623 = vunpack.c.l.b16 %v530
    %v624 = vunpack.c.h.b16 %v530
    %v625 = vunpack.c.l.b16 %v531
    %v626 = vunpack.c.h.b16 %v531
    %v627 = vunpack.c.l.b16 %v532
    %v628 = vunpack.c.h.b16 %v532
    %v629 = vpack.c.b16 %v567, %v565
    %v630 = vpack.c.b16 %v568, %v566
    %v631 = vpack.c.b16 %v571, %v569
    %v632 = vpack.c.b16 %v572, %v570
    %v633 = vpack.c.b16 %v575, %v573
    %v634 = vpack.c.b16 %v576, %v574
    %v635 = vpack.c.b16 %v579, %v577
    %v636 = vpack.c.b16 %v580, %v578
    %v637 = vpack.c.b16 %v583, %v581
    %v638 = vpack.c.b16 %v584, %v582
    %v639 = vpack.c.b16 %v587, %v585
    %v640 = vpack.c.b16 %v588, %v586
    %v641 = vpack.c.b16 %v591, %v589
    %v642 = vpack.c.b16 %v592, %v590
    %v643 = vpack.c.b16 %v595, %v593
    %v644 = vpack.c.b16 %v596, %v594
    %v645 = vpack.c.b16 %v599, %v597
    %v646 = vpack.c.b16 %v600, %v598
    %v647 = vpack.c.b16 %v603, %v601
    %v648 = vpack.c.b16 %v604, %v602
    %v649 = vpack.c.b16 %v607, %v605
    %v650 = vpack.c.b16 %v608, %v606
    %v651 = vpack.c.b16 %v611, %v609
    %v652 = vpack.c.b16 %v612, %v610
    %v653 = vpack.c.b16 %v615, %v613
    %v654 = vpack.c.b16 %v616, %v614
    %v655 = vpack.c.b16 %v619, %v617
    %v656 = vpack.c.b16 %v620, %v618
    %v657 = vpack.c.b16 %v623, %v621
    %v658 = vpack.c.b16 %v624, %v622
    %v659 = vpack.c.b16 %v627, %v625
    %v660 = vpack.c.b16 %v628, %v626
    %693 = vmatprep.subr.bf16.mxu0 %v630
    %694 = vmatpush1.bf16.msra.mxu0 %v629
    %695 = vmatprep.subr.bf16.mxu0 %v632
    %696 = vmatpush1.bf16.msra.mxu0 %v631
    %697 = vmatprep.subr.bf16.mxu0 %v634
    %698 = vmatpush1.bf16.msra.mxu0 %v633
    %699 = vmatprep.subr.bf16.mxu0 %v636
    %700 = vmatpush1.bf16.msra.mxu0 %v635
    %701 = vmatprep.subr.bf16.mxu0 %v638
    %702 = vmatpush1.bf16.msra.mxu0 %v637
    %703 = vmatprep.subr.bf16.mxu0 %v640
    %704 = vmatpush1.bf16.msra.mxu0 %v639
    %705 = vmatprep.subr.bf16.mxu0 %v642
    %706 = vmatpush1.bf16.msra.mxu0 %v641
    %707 = vmatprep.subr.bf16.mxu0 %v644
    %708 = vmatpush1.bf16.msra.mxu0 %v643
    %709 = vmatprep.subr.bf16.mxu0 %v646
    %710 = vmatpush1.bf16.msra.mxu0 %v645
    %711 = vmatprep.subr.bf16.mxu0 %v648
    %712 = vmatpush1.bf16.msra.mxu0 %v647
    %713 = vmatprep.subr.bf16.mxu0 %v650
    %714 = vmatpush1.bf16.msra.mxu0 %v649
    %715 = vmatprep.subr.bf16.mxu0 %v652
    %716 = vmatpush1.bf16.msra.mxu0 %v651
    %717 = vmatprep.subr.bf16.mxu0 %v654
    %718 = vmatpush1.bf16.msra.mxu0 %v653
    %719 = vmatprep.subr.bf16.mxu0 %v656
    %720 = vmatpush1.bf16.msra.mxu0 %v655
    %721 = vmatprep.subr.bf16.mxu0 %v658
    %722 = vmatpush1.bf16.msra.mxu0 %v657
    %723 = vmatprep.subr.bf16.mxu0 %v660
    %724 = vmatpush1.bf16.msra.mxu0 %v659
    %725 = vmatprep.mubr.bf16.mxu0 %v499
    %726 = vmatmul.mubr.bf16.gmra.mrb[0].mxu0 %v498
    %v727 = vpop.f32.mrb[0].mxu0
    %v728 = vadd.f32 0.0, %v727
    %v729 = vpop.f32.mrb[0].mxu0
    %v730 = vadd.f32 0.0, %v729
    %v731 = vpop.f32.mrb[0].mxu0
    %v732 = vpop.f32.mrb[0].mxu0
    %733 = vdwg.mxu0
    %734 = vst [vmem:[%s2] sm:$0xff] %v728
    %735 = vst [vmem:[%s2 + $0x8] sm:$0xff] %v730
    // Predicated region
    $region14: #{mera_forward.1} parent=1 // pred_check
      _
    $region15: #{mera_forward.1} parent=1 // pred_check_branch
      %737 = sbr.rel (0) target = $region17
    $region16: #{mera_forward.1} parent=1 // pred_region
      _
    $region17: #{mera_forward.1} parent=1 // pred_fallthru
      _
    // Predicated region
    $region18: #{mera_forward.1} parent=1 // pred_check
      _
    $region19: #{mera_forward.1} parent=1 // pred_check_branch
      %739 = sbr.rel (0) target = $region21
    $region20: #{mera_forward.1} parent=1 // pred_region
      _
    $region21: #{mera_forward.1} parent=1 // pred_fallthru
      _
    %740 = vsyncpa [#allocation3], 1

</llo_original>
